<compile_context>
chip_gen: v7x
topology: tpu7x:2x2x1
jax: 0.10.0
libtpu: 0.0.40
codegen_flags: <defaults>
</compile_context>

<pallas_src>
import functools

import jax
import jax.numpy as jnp
from jax import lax
from jax.experimental import pallas as pl
from jax.experimental.pallas import tpu as pltpu

KH = KW = 4   # Conv2d kernel size
POOL = 2      # MaxPool2d kernel size == stride


def net_kernel(planes_ref, params_ref, o_ref, *, unit_weights):
    # planes_ref: (4, Hh, N*Wh) VMEM   planes[2p+q, i, n*Wh+j] = x[n, 0, 2i+p, 2j+q]
    # params_ref: (KH*KW + 1,)  SMEM   16 conv weights (row-major) followed by the bias
    # o_ref:      (N, PH, PW)   VMEM   final pooled output, written per image
    n_img, PH, PW = o_ref.shape
    _, _, w_tot = planes_ref.shape
    w_half = w_tot // n_img
    w_acc = w_tot - KW // 2                 # accumulator lane width (covers all valid lanes)

    # Hoist all scalar SMEM loads + vreg splats out of the parity loops.
    bias_tile = jnp.full((PH, w_acc), params_ref[KH * KW], jnp.float32)
    if unit_weights:
        w_tiles = None                      # fill_(1) weights: skip the 64 vmuls entirely
    else:
        w_tiles = [jnp.full((PH, w_acc), params_ref[i], jnp.float32)
                   for i in range(KH * KW)]

    # Load each parity plane once.
    X = [planes_ref[i] for i in range(2 * 2)]

    # Dedup the contiguous static slices (trace-time cache).
    cache = {}

    def plane_slice(p, q, ro, co):
        key = (p, q, ro, co)
        if key not in cache:
            cache[key] = X[2 * p + q][ro:ro + PH, co:co + w_acc]
        return cache[key]

    # conv_parity[ri, ci][r, lane] == conv(x)[image(lane), 2r+ri, 2c+ci]; the 2x2/stride-2
    # max pool is then an elementwise max over the four parities.
    pooled = None
    for ri in range(POOL):
        for ci in range(POOL):
            acc = bias_tile                              # bias-initialized accumulator
            for di in range(KH):
                for dj in range(KW):
                    a, b = ri + di, ci + dj
                    term = plane_slice(a % 2, b % 2, a // 2, b // 2)
                    if unit_weights:
                        acc = acc + term
                    else:
                        acc = acc + term * w_tiles[di * KW + dj]
            acc = jnp.maximum(acc, 0.0)                  # ReLU
            pooled = acc if pooled is None else jnp.maximum(pooled, acc)

    # Write the final per-image tiles directly (no post-kernel slicing/stacking).
    for n in range(n_img):
        o_ref[n] = pooled[:, n * w_half:n * w_half + PW]


def net_forward(x, conv_w, conv_b, *, unit_weights=False):
    N, Cin, H, W = x.shape
    assert Cin == 1, "module is Conv2d(1, 1, ...)"
    assert H % 2 == 0 and W % 2 == 0, "parity decomposition needs even H, W"
    OH, OW = H - KH + 1, W - KW + 1
    PH, PW = OH // POOL, OW // POOL
    Hh, Wh = H // 2, W // 2
    # Per-image static slices must never read/select across an image boundary.
    assert PH + KH // 2 <= Hh and PW + KW // 2 <= Wh, (PH, PW, Hh, Wh)

    # Parity deinterleave + batch-on-lanes packing (fused by XLA into one small copy):
    #   planes[2p+q, i, n*Wh + j] = x[n, 0, 2i+p, 2j+q]
    x5 = x.reshape(N, Hh, 2, Wh, 2).astype(jnp.float32)
    planes = jnp.transpose(x5, (2, 4, 1, 0, 3)).reshape(2 * 2, Hh, N * Wh)

    # Single SMEM parameter vector: 16 weights followed by the bias.
    params = jnp.concatenate(
        [conv_w.reshape(-1), conv_b.reshape(-1)]).astype(jnp.float32)

    pooled = pl.pallas_call(
        functools.partial(net_kernel, unit_weights=unit_weights),
        out_shape=jax.ShapeDtypeStruct((N, PH, PW), jnp.float32),
        in_specs=[pl.BlockSpec(memory_space=pltpu.MemorySpace.VMEM),
                  pl.BlockSpec(memory_space=pltpu.MemorySpace.SMEM)],
        out_specs=pl.BlockSpec(memory_space=pltpu.MemorySpace.VMEM),
    )(planes, params)

    return pooled.reshape(N, 1, PH, PW)     # free reshape, no data movement


if __name__ == "__main__":
    key = jax.random.PRNGKey(0)
    x = jax.random.normal(key, (2, 1, 16, 16), dtype=jnp.float32)

    # Deterministic parameters exactly as in the module __init__.
    conv_w = jnp.ones((KH, KW), jnp.float32)   # conv_.weight.data.fill_(1)
    conv_b = jnp.zeros((1,), jnp.float32)      # conv_.bias.data.fill_(0)
    # TODO(synk): self.fc1 = nn.Linear(25, 5) is never used in forward(); not materialized.

    out = jax.block_until_ready(net_forward(x, conv_w, conv_b, unit_weights=True))

    # Independent plain-JAX reference check.
    conv = lax.conv_general_dilated(
        x, jnp.broadcast_to(conv_w, (1, 1, KH, KW)),
        window_strides=(1, 1), padding="VALID",
        dimension_numbers=("NCHW", "OIHW", "NCHW")) + conv_b.reshape(1, 1, 1, 1)
    relu = jnp.maximum(conv, 0.0)
    ref = lax.reduce_window(relu, -jnp.inf, lax.max,
                            (1, 1, POOL, POOL), (1, 1, POOL, POOL), "VALID")
    assert out.shape == ref.shape == (2, 1, 6, 6), (out.shape, ref.shape)
    assert jnp.allclose(out, ref, atol=1e-5, rtol=1e-5)

    # Also exercise the general (weighted) path once.
    out_general = jax.block_until_ready(net_forward(x, conv_w, conv_b))
    assert jnp.allclose(out_general, ref, atol=1e-5, rtol=1e-5)

    print("KERNEL_OK")
</pallas_src>

<mosaic_0001>
module attributes {stable_mosaic.version = 11 : i64} {
  func.func @net_kernel(%arg0: memref<4x8x16xf32, #tpu.memory_space<vmem>>, %arg1: memref<17xf32, #tpu.memory_space<smem>>, %arg2: memref<2x6x6xf32, #tpu.memory_space<vmem>>) attributes {dimension_semantics = [], scalar_prefetch = 0 : i64, scratch_operands = 0 : i64, tpu.core_type = #tpu.core_type<tc>} {
    %c16 = arith.constant 16 : index
    %0 = memref.load %arg1[%c16] : memref<17xf32, #tpu.memory_space<smem>>
    %1 = vector.broadcast %0 : f32 to vector<6x14xf32>
    %c0 = arith.constant 0 : index
    %c0_0 = arith.constant 0 : index
    %c0_1 = arith.constant 0 : index
    %2 = vector.load %arg0[%c0, %c0_0, %c0_1] : memref<4x8x16xf32, #tpu.memory_space<vmem>>, vector<1x8x16xf32>
    %3 = vector.shape_cast %2 : vector<1x8x16xf32> to vector<8x16xf32>
    %c1 = arith.constant 1 : index
    %c0_2 = arith.constant 0 : index
    %c0_3 = arith.constant 0 : index
    %4 = vector.load %arg0[%c1, %c0_2, %c0_3] : memref<4x8x16xf32, #tpu.memory_space<vmem>>, vector<1x8x16xf32>
    %5 = vector.shape_cast %4 : vector<1x8x16xf32> to vector<8x16xf32>
    %c2 = arith.constant 2 : index
    %c0_4 = arith.constant 0 : index
    %c0_5 = arith.constant 0 : index
    %6 = vector.load %arg0[%c2, %c0_4, %c0_5] : memref<4x8x16xf32, #tpu.memory_space<vmem>>, vector<1x8x16xf32>
    %7 = vector.shape_cast %6 : vector<1x8x16xf32> to vector<8x16xf32>
    %c3 = arith.constant 3 : index
    %c0_6 = arith.constant 0 : index
    %c0_7 = arith.constant 0 : index
    %8 = vector.load %arg0[%c3, %c0_6, %c0_7] : memref<4x8x16xf32, #tpu.memory_space<vmem>>, vector<1x8x16xf32>
    %9 = vector.shape_cast %8 : vector<1x8x16xf32> to vector<8x16xf32>
    %10 = vector.extract_strided_slice %3 {offsets = [0, 0], sizes = [6, 14], strides = [1, 1]} : vector<8x16xf32> to vector<6x14xf32>
    %11 = arith.addf %1, %10 : vector<6x14xf32>
    %12 = vector.extract_strided_slice %5 {offsets = [0, 0], sizes = [6, 14], strides = [1, 1]} : vector<8x16xf32> to vector<6x14xf32>
    %13 = arith.addf %11, %12 : vector<6x14xf32>
    %14 = vector.extract_strided_slice %3 {offsets = [0, 1], sizes = [6, 14], strides = [1, 1]} : vector<8x16xf32> to vector<6x14xf32>
    %15 = arith.addf %13, %14 : vector<6x14xf32>
    %16 = vector.extract_strided_slice %5 {offsets = [0, 1], sizes = [6, 14], strides = [1, 1]} : vector<8x16xf32> to vector<6x14xf32>
    %17 = arith.addf %15, %16 : vector<6x14xf32>
    %18 = vector.extract_strided_slice %7 {offsets = [0, 0], sizes = [6, 14], strides = [1, 1]} : vector<8x16xf32> to vector<6x14xf32>
    %19 = arith.addf %17, %18 : vector<6x14xf32>
    %20 = vector.extract_strided_slice %9 {offsets = [0, 0], sizes = [6, 14], strides = [1, 1]} : vector<8x16xf32> to vector<6x14xf32>
    %21 = arith.addf %19, %20 : vector<6x14xf32>
    %22 = vector.extract_strided_slice %7 {offsets = [0, 1], sizes = [6, 14], strides = [1, 1]} : vector<8x16xf32> to vector<6x14xf32>
    %23 = arith.addf %21, %22 : vector<6x14xf32>
    %24 = vector.extract_strided_slice %9 {offsets = [0, 1], sizes = [6, 14], strides = [1, 1]} : vector<8x16xf32> to vector<6x14xf32>
    %25 = arith.addf %23, %24 : vector<6x14xf32>
    %26 = vector.extract_strided_slice %3 {offsets = [1, 0], sizes = [6, 14], strides = [1, 1]} : vector<8x16xf32> to vector<6x14xf32>
    %27 = arith.addf %25, %26 : vector<6x14xf32>
    %28 = vector.extract_strided_slice %5 {offsets = [1, 0], sizes = [6, 14], strides = [1, 1]} : vector<8x16xf32> to vector<6x14xf32>
    %29 = arith.addf %27, %28 : vector<6x14xf32>
    %30 = vector.extract_strided_slice %3 {offsets = [1, 1], sizes = [6, 14], strides = [1, 1]} : vector<8x16xf32> to vector<6x14xf32>
    %31 = arith.addf %29, %30 : vector<6x14xf32>
    %32 = vector.extract_strided_slice %5 {offsets = [1, 1], sizes = [6, 14], strides = [1, 1]} : vector<8x16xf32> to vector<6x14xf32>
    %33 = arith.addf %31, %32 : vector<6x14xf32>
    %34 = vector.extract_strided_slice %7 {offsets = [1, 0], sizes = [6, 14], strides = [1, 1]} : vector<8x16xf32> to vector<6x14xf32>
    %35 = arith.addf %33, %34 : vector<6x14xf32>
    %36 = vector.extract_strided_slice %9 {offsets = [1, 0], sizes = [6, 14], strides = [1, 1]} : vector<8x16xf32> to vector<6x14xf32>
    %37 = arith.addf %35, %36 : vector<6x14xf32>
    %38 = vector.extract_strided_slice %7 {offsets = [1, 1], sizes = [6, 14], strides = [1, 1]} : vector<8x16xf32> to vector<6x14xf32>
    %39 = arith.addf %37, %38 : vector<6x14xf32>
    %40 = vector.extract_strided_slice %9 {offsets = [1, 1], sizes = [6, 14], strides = [1, 1]} : vector<8x16xf32> to vector<6x14xf32>
    %41 = arith.addf %39, %40 : vector<6x14xf32>
    %cst = arith.constant 0.000000e+00 : f32
    %42 = vector.broadcast %cst : f32 to vector<6x14xf32>
    %43 = arith.maximumf %41, %42 : vector<6x14xf32>
    %44 = arith.addf %1, %12 : vector<6x14xf32>
    %45 = arith.addf %44, %14 : vector<6x14xf32>
    %46 = arith.addf %45, %16 : vector<6x14xf32>
    %47 = vector.extract_strided_slice %3 {offsets = [0, 2], sizes = [6, 14], strides = [1, 1]} : vector<8x16xf32> to vector<6x14xf32>
    %48 = arith.addf %46, %47 : vector<6x14xf32>
    %49 = arith.addf %48, %20 : vector<6x14xf32>
    %50 = arith.addf %49, %22 : vector<6x14xf32>
    %51 = arith.addf %50, %24 : vector<6x14xf32>
    %52 = vector.extract_strided_slice %7 {offsets = [0, 2], sizes = [6, 14], strides = [1, 1]} : vector<8x16xf32> to vector<6x14xf32>
    %53 = arith.addf %51, %52 : vector<6x14xf32>
    %54 = arith.addf %53, %28 : vector<6x14xf32>
    %55 = arith.addf %54, %30 : vector<6x14xf32>
    %56 = arith.addf %55, %32 : vector<6x14xf32>
    %57 = vector.extract_strided_slice %3 {offsets = [1, 2], sizes = [6, 14], strides = [1, 1]} : vector<8x16xf32> to vector<6x14xf32>
    %58 = arith.addf %56, %57 : vector<6x14xf32>
    %59 = arith.addf %58, %36 : vector<6x14xf32>
    %60 = arith.addf %59, %38 : vector<6x14xf32>
    %61 = arith.addf %60, %40 : vector<6x14xf32>
    %62 = vector.extract_strided_slice %7 {offsets = [1, 2], sizes = [6, 14], strides = [1, 1]} : vector<8x16xf32> to vector<6x14xf32>
    %63 = arith.addf %61, %62 : vector<6x14xf32>
    %cst_8 = arith.constant 0.000000e+00 : f32
    %64 = vector.broadcast %cst_8 : f32 to vector<6x14xf32>
    %65 = arith.maximumf %63, %64 : vector<6x14xf32>
    %66 = arith.maximumf %43, %65 : vector<6x14xf32>
    %67 = arith.addf %1, %18 : vector<6x14xf32>
    %68 = arith.addf %67, %20 : vector<6x14xf32>
    %69 = arith.addf %68, %22 : vector<6x14xf32>
    %70 = arith.addf %69, %24 : vector<6x14xf32>
    %71 = arith.addf %70, %26 : vector<6x14xf32>
    %72 = arith.addf %71, %28 : vector<6x14xf32>
    %73 = arith.addf %72, %30 : vector<6x14xf32>
    %74 = arith.addf %73, %32 : vector<6x14xf32>
    %75 = arith.addf %74, %34 : vector<6x14xf32>
    %76 = arith.addf %75, %36 : vector<6x14xf32>
    %77 = arith.addf %76, %38 : vector<6x14xf32>
    %78 = arith.addf %77, %40 : vector<6x14xf32>
    %79 = vector.extract_strided_slice %3 {offsets = [2, 0], sizes = [6, 14], strides = [1, 1]} : vector<8x16xf32> to vector<6x14xf32>
    %80 = arith.addf %78, %79 : vector<6x14xf32>
    %81 = vector.extract_strided_slice %5 {offsets = [2, 0], sizes = [6, 14], strides = [1, 1]} : vector<8x16xf32> to vector<6x14xf32>
    %82 = arith.addf %80, %81 : vector<6x14xf32>
    %83 = vector.extract_strided_slice %3 {offsets = [2, 1], sizes = [6, 14], strides = [1, 1]} : vector<8x16xf32> to vector<6x14xf32>
    %84 = arith.addf %82, %83 : vector<6x14xf32>
    %85 = vector.extract_strided_slice %5 {offsets = [2, 1], sizes = [6, 14], strides = [1, 1]} : vector<8x16xf32> to vector<6x14xf32>
    %86 = arith.addf %84, %85 : vector<6x14xf32>
    %cst_9 = arith.constant 0.000000e+00 : f32
    %87 = vector.broadcast %cst_9 : f32 to vector<6x14xf32>
    %88 = arith.maximumf %86, %87 : vector<6x14xf32>
    %89 = arith.maximumf %66, %88 : vector<6x14xf32>
    %90 = arith.addf %1, %20 : vector<6x14xf32>
    %91 = arith.addf %90, %22 : vector<6x14xf32>
    %92 = arith.addf %91, %24 : vector<6x14xf32>
    %93 = arith.addf %92, %52 : vector<6x14xf32>
    %94 = arith.addf %93, %28 : vector<6x14xf32>
    %95 = arith.addf %94, %30 : vector<6x14xf32>
    %96 = arith.addf %95, %32 : vector<6x14xf32>
    %97 = arith.addf %96, %57 : vector<6x14xf32>
    %98 = arith.addf %97, %36 : vector<6x14xf32>
    %99 = arith.addf %98, %38 : vector<6x14xf32>
    %100 = arith.addf %99, %40 : vector<6x14xf32>
    %101 = arith.addf %100, %62 : vector<6x14xf32>
    %102 = arith.addf %101, %81 : vector<6x14xf32>
    %103 = arith.addf %102, %83 : vector<6x14xf32>
    %104 = arith.addf %103, %85 : vector<6x14xf32>
    %105 = vector.extract_strided_slice %3 {offsets = [2, 2], sizes = [6, 14], strides = [1, 1]} : vector<8x16xf32> to vector<6x14xf32>
    %106 = arith.addf %104, %105 : vector<6x14xf32>
    %cst_10 = arith.constant 0.000000e+00 : f32
    %107 = vector.broadcast %cst_10 : f32 to vector<6x14xf32>
    %108 = arith.maximumf %106, %107 : vector<6x14xf32>
    %109 = arith.maximumf %89, %108 : vector<6x14xf32>
    %110 = vector.extract_strided_slice %109 {offsets = [0, 0], sizes = [6, 6], strides = [1, 1]} : vector<6x14xf32> to vector<6x6xf32>
    %c0_11 = arith.constant 0 : index
    %c0_12 = arith.constant 0 : index
    %c0_13 = arith.constant 0 : index
    %111 = vector.load %arg2[%c0_11, %c0_12, %c0_13] : memref<2x6x6xf32, #tpu.memory_space<vmem>>, vector<1x6x6xf32>
    %112 = vector.shape_cast %111 : vector<1x6x6xf32> to vector<6x6xf32>
    %113 = vector.shape_cast %110 : vector<6x6xf32> to vector<1x6x6xf32>
    tpu.vector_store %arg2[%c0_11, %c0_12, %c0_13], %113 {strides = array<i32>} : memref<2x6x6xf32, #tpu.memory_space<vmem>>, vector<1x6x6xf32>,
    %114 = vector.extract_strided_slice %109 {offsets = [0, 8], sizes = [6, 6], strides = [1, 1]} : vector<6x14xf32> to vector<6x6xf32>
    %c1_14 = arith.constant 1 : index
    %c0_15 = arith.constant 0 : index
    %c0_16 = arith.constant 0 : index
    %115 = vector.load %arg2[%c1_14, %c0_15, %c0_16] : memref<2x6x6xf32, #tpu.memory_space<vmem>>, vector<1x6x6xf32>
    %116 = vector.shape_cast %115 : vector<1x6x6xf32> to vector<6x6xf32>
    %117 = vector.shape_cast %114 : vector<6x6xf32> to vector<1x6x6xf32>
    tpu.vector_store %arg2[%c1_14, %c0_15, %c0_16], %117 {strides = array<i32>} : memref<2x6x6xf32, #tpu.memory_space<vmem>>, vector<1x6x6xf32>,
    return
  }
}

</mosaic_0001>

<llo_original>
// kernel: tpu_custom_call.1
$region0: #{tpu_custom_call.1}
  #allocation0 [shape = 'u32[]', space=smem, size = 0x4, offset = 0x4, fixed_abs, tag = 'smem constant byte address 0x4 - core index']
  #allocation1 [shape = 'u32[144,128]{1,0:T(1,128)}', space=vmem, size = 0x12000, scoped, tag = 'internal scratch']
  %s0 = inlined_call_operand.hbm [shape: f32[4,8,16], index: 0, kind: input, shape index: {}]
  %s1 = inlined_call_operand.vmem [shape: f32[17], index: 1, kind: input, shape index: {}]
  %s2 = inlined_call_operand.vmem [shape: f32[2,6,6], index: 2, kind: output, shape index: {}]
  %s3 = sld [smem:[#allocation0]]
  $region26: #{tpu_custom_call.1} parent=0
    _
  %s5 = ssub.s32 1, %s3
  %s6 = scalar_select 0, %s5, %s3
  $region1: #{tpu_custom_call.1} parent=0
    #allocation2 [shape = 'u8[16384]{0}', space=vmem, size = 0x4000, scoped, tag = 'input window, operand 0, single buffered']
    #allocation3 [shape = 's32[1]{0}', space=sflag, size = 0x4, scoped, tag = 'scoped memory for tpu_custom_call.1']
    #allocation4 [shape = 's32[1]{0}', space=sflag, size = 0x4, scoped, tag = 'scoped memory for tpu_custom_call.1']
    #allocation5 [shape = 'u8[512]{0}', space=smem, size = 0x200, scoped, tag = 'input window, operand 1, single buffered']
    %7 = vsyncpa [#allocation3], 0
    %8 = vsyncpa [#allocation4], 0
    // Predicated region
    $region2: #{tpu_custom_call.1} parent=1 // pred_check
      _
    $region3: #{tpu_custom_call.1} parent=1 // pred_check_branch
      %10 = sbr.rel (0) target = $region5
    $region4: #{tpu_custom_call.1} parent=1 // pred_region
      %s12 = ssub.s32 512, 512
      %13 = vsyncadd [#allocation3], %s12
      %s14 = sshll.u32 [#allocation2], 4
      %s15 = int_to_ptr.vmem [resolvable:$true] %s14
      %20 = dma.hbm_to_vmem [thread:$0]  %s0, 512, %s15, [#allocation3], 128, 128, 8
    $region5: #{tpu_custom_call.1} parent=1 // pred_fallthru
      _
    // Predicated region
    $region6: #{tpu_custom_call.1} parent=1 // pred_check
      _
    $region7: #{tpu_custom_call.1} parent=1 // pred_check_branch
      %22 = sbr.rel (0) target = $region9
    $region8: #{tpu_custom_call.1} parent=1 // pred_region
      %s24 = ssub.s32 16, 16
      %25 = vsyncadd [#allocation4], %s24
      %s27 = sshll.u32 %s1, 4
      %s28 = int_to_ptr.vmem [resolvable:$true] %s27
      %30 = dma.vmem_to_smem %s28, 16, [#allocation5], [#allocation4]
    $region9: #{tpu_custom_call.1} parent=1 // pred_fallthru
      _
    // Predicated region
    $region10: #{tpu_custom_call.1} parent=1 // pred_check
      _
    $region11: #{tpu_custom_call.1} parent=1 // pred_check_branch
      %32 = sbr.rel (0) target = $region13
    $region12: #{tpu_custom_call.1} parent=1 // pred_region
      %33 = dma.done [#allocation3], 512
    $region13: #{tpu_custom_call.1} parent=1 // pred_fallthru
      _
    // Predicated region
    $region14: #{tpu_custom_call.1} parent=1 // pred_check
      _
    $region15: #{tpu_custom_call.1} parent=1 // pred_check_branch
      %35 = sbr.rel (0) target = $region17
    $region16: #{tpu_custom_call.1} parent=1 // pred_region
      %36 = dma.done [#allocation4], 16
    $region17: #{tpu_custom_call.1} parent=1 // pred_fallthru
      _
    %37 = sfence
    %s38 = sld [smem:[#allocation5 + $0x10]]
    %v39 = vstv %s38
    %v40 = vld [vmem:[#allocation2] sm:$0xff]
    %s41 = scalar_lea.vmem [#allocation2], 8
    %v42 = vld [vmem:[%s41] sm:$0xff]
    %s43 = scalar_lea.vmem [#allocation2], 16
    %v44 = vld [vmem:[%s43] sm:$0xff]
    %s45 = scalar_lea.vmem [#allocation2], 24
    %v46 = vld [vmem:[%s45] sm:$0xff]
    %v47 = vadd.f32 %v39, %v40
    %v48 = vadd.f32 %v47, %v42
    %50 = vrot.lane.b32.xlu0 %v40, 127
    %v51 = vpop.permute.xlu0 %50
    %v53 = vadd.f32 %v48, %v51
    %55 = vrot.lane.b32.xlu0 %v42, 127
    %v56 = vpop.permute.xlu0 %55
    %v58 = vadd.f32 %v53, %v56
    %v59 = vadd.f32 %v58, %v44
    %v60 = vadd.f32 %v59, %v46
    %62 = vrot.lane.b32.xlu0 %v44, 127
    %v63 = vpop.permute.xlu0 %62
    %v65 = vadd.f32 %v60, %v63
    %67 = vrot.lane.b32.xlu0 %v46, 127
    %v68 = vpop.permute.xlu0 %67
    %v70 = vadd.f32 %v65, %v68
    %v71 = vrot.slane %v40, 1
    %v73 = vadd.f32 %v70, %v71
    %v74 = vrot.slane %v42, 1
    %v76 = vadd.f32 %v73, %v74
    %77 = vrot.lane.b32.xlu0 %v71, 127
    %v78 = vpop.permute.xlu0 %77
    %v80 = vadd.f32 %v76, %v78
    %81 = vrot.lane.b32.xlu0 %v74, 127
    %v82 = vpop.permute.xlu0 %81
    %v84 = vadd.f32 %v80, %v82
    %v85 = vrot.slane %v44, 1
    %v87 = vadd.f32 %v84, %v85
    %v88 = vrot.slane %v46, 1
    %v90 = vadd.f32 %v87, %v88
    %91 = vrot.lane.b32.xlu0 %v85, 127
    %v92 = vpop.permute.xlu0 %91
    %v94 = vadd.f32 %v90, %v92
    %95 = vrot.lane.b32.xlu0 %v88, 127
    %v96 = vpop.permute.xlu0 %95
    %v98 = vadd.f32 %v94, %v96
    %v99 = vmax.f32 %v98, 0.0
    %v100 = vadd.f32 %v39, %v42
    %v101 = vadd.f32 %v100, %v51
    %v102 = vadd.f32 %v101, %v56
    %103 = vrot.lane.b32.xlu0 %v40, 126
    %v104 = vpop.permute.xlu0 %103
    %v106 = vadd.f32 %v102, %v104
    %v107 = vadd.f32 %v106, %v46
    %v108 = vadd.f32 %v107, %v63
    %v109 = vadd.f32 %v108, %v68
    %110 = vrot.lane.b32.xlu0 %v44, 126
    %v111 = vpop.permute.xlu0 %110
    %v113 = vadd.f32 %v109, %v111
    %v114 = vadd.f32 %v113, %v74
    %v115 = vadd.f32 %v114, %v78
    %v116 = vadd.f32 %v115, %v82
    %117 = vrot.lane.b32.xlu0 %v71, 126
    %v118 = vpop.permute.xlu0 %117
    %v120 = vadd.f32 %v116, %v118
    %v121 = vadd.f32 %v120, %v88
    %v122 = vadd.f32 %v121, %v92
    %v123 = vadd.f32 %v122, %v96
    %124 = vrot.lane.b32.xlu0 %v85, 126
    %v125 = vpop.permute.xlu0 %124
    %v127 = vadd.f32 %v123, %v125
    %v128 = vmax.f32 %v127, 0.0
    %v129 = vmax.f32 %v99, %v128
    %v130 = vadd.f32 %v39, %v44
    %v131 = vadd.f32 %v130, %v46
    %v132 = vadd.f32 %v131, %v63
    %v133 = vadd.f32 %v132, %v68
    %v134 = vadd.f32 %v133, %v71
    %v135 = vadd.f32 %v134, %v74
    %v136 = vadd.f32 %v135, %v78
    %v137 = vadd.f32 %v136, %v82
    %v138 = vadd.f32 %v137, %v85
    %v139 = vadd.f32 %v138, %v88
    %v140 = vadd.f32 %v139, %v92
    %v141 = vadd.f32 %v140, %v96
    %v142 = vrot.slane %v40, 2
    %v144 = vadd.f32 %v141, %v142
    %v145 = vrot.slane %v42, 2
    %v147 = vadd.f32 %v144, %v145
    %148 = vrot.lane.b32.xlu0 %v142, 127
    %v149 = vpop.permute.xlu0 %148
    %v151 = vadd.f32 %v147, %v149
    %152 = vrot.lane.b32.xlu0 %v145, 127
    %v153 = vpop.permute.xlu0 %152
    %v155 = vadd.f32 %v151, %v153
    %v156 = vmax.f32 %v155, 0.0
    %v157 = vmax.f32 %v129, %v156
    %v158 = vadd.f32 %v39, %v46
    %v159 = vadd.f32 %v158, %v63
    %v160 = vadd.f32 %v159, %v68
    %v161 = vadd.f32 %v160, %v111
    %v162 = vadd.f32 %v161, %v74
    %v163 = vadd.f32 %v162, %v78
    %v164 = vadd.f32 %v163, %v82
    %v165 = vadd.f32 %v164, %v118
    %v166 = vadd.f32 %v165, %v88
    %v167 = vadd.f32 %v166, %v92
    %v168 = vadd.f32 %v167, %v96
    %v169 = vadd.f32 %v168, %v125
    %v170 = vadd.f32 %v169, %v145
    %v171 = vadd.f32 %v170, %v149
    %v172 = vadd.f32 %v171, %v153
    %173 = vrot.lane.b32.xlu0 %v142, 126
    %v174 = vpop.permute.xlu0 %173
    %v176 = vadd.f32 %v172, %v174
    %v177 = vmax.f32 %v176, 0.0
    %v178 = vmax.f32 %v157, %v177
    %vm179 = vcmask 46080
    %180 = vst.msk [vmem:[%s2] sm:$0x3f] %vm179, %v178
    %182 = vrot.lane.b32.xlu0 %v178, 120
    %v183 = vpop.permute.xlu0 %182
    %s185 = scalar_lea.vmem %s2, 8
    %186 = vst.msk [vmem:[%s185] sm:$0x3f] %vm179, %v183
    // Predicated region
    $region18: #{tpu_custom_call.1} parent=1 // pred_check
      _
    $region19: #{tpu_custom_call.1} parent=1 // pred_check_branch
      %188 = sbr.rel (0) target = $region21
    $region20: #{tpu_custom_call.1} parent=1 // pred_region
      _
    $region21: #{tpu_custom_call.1} parent=1 // pred_fallthru
      _
    // Predicated region
    $region22: #{tpu_custom_call.1} parent=1 // pred_check
      _
    $region23: #{tpu_custom_call.1} parent=1 // pred_check_branch
      %190 = sbr.rel (0) target = $region25
    $region24: #{tpu_custom_call.1} parent=1 // pred_region
      _
    $region25: #{tpu_custom_call.1} parent=1 // pred_fallthru
      _
    %191 = vsyncpa [#allocation3], 1
    %192 = vsyncpa [#allocation4], 1

</llo_original>
